<compile_context>
chip_gen: v7x
topology: tpu7x:2x2x1
jax: 0.10.0
libtpu: 0.0.40
codegen_flags: <defaults>
</compile_context>

<pallas_src>
import jax
import jax.numpy as jnp
from jax.experimental import pallas as pl
from jax.experimental.pallas import tpu as pltpu

_LANE = 128
_SUBLANE = 8


def _cdiv(a, b):
    return -(-a // b)


def _round_up(x, m):
    return _cdiv(x, m) * m


def _vmem_caps():
    """Generation-aware scoped-VMEM limit and tile budget."""
    cap = 128 * 1024 * 1024
    try:
        info = pltpu.get_tpu_info()
        cap = int(getattr(info, "vmem_capacity_bytes", cap))
    except Exception:
        pass
    limit = int(min((cap * 3) // 4, 112 * 1024 * 1024))   # 96 MiB on 128-MiB parts, 48 MiB on v7x
    budget = int(min(cap // 2, 80 * 1024 * 1024))         # leaves headroom for in-kernel temps
    return limit, budget


_VMEM_LIMIT, _VMEM_BUDGET = _vmem_caps()


def _compiler_params():
    return pltpu.CompilerParams(dimension_semantics=("parallel",),
                                vmem_limit_bytes=_VMEM_LIMIT)


def _pick_tile_rows(n_rows, per_row_bytes, resident_bytes,
                    budget_bytes=_VMEM_BUDGET, max_tile=1024):
    """Largest row tile (multiple of 8) such that double-buffered resident
    weights plus double-buffered row blocks stay under the VMEM budget, and
    the row grid keeps >=2 steps when possible (v7x has 2 TensorCores)."""
    avail = max(budget_bytes - resident_bytes, 2 * _SUBLANE * per_row_bytes)
    cap = avail // (2 * max(per_row_bytes, 1))
    cap = max(_SUBLANE, (cap // _SUBLANE) * _SUBLANE)
    two_core_cap = _round_up(_cdiv(max(n_rows, 1), 2), _SUBLANE)
    tile = min(max_tile, cap, two_core_cap, _round_up(max(n_rows, 1), _SUBLANE))
    return max(_SUBLANE, (tile // _SUBLANE) * _SUBLANE)


# ----------------------------------------------------------------------------
# 2-layer head, row-gridded, resident bf16 weights, ONE lane-dense matmul per
# layer.  The aug-mean + concat of the original forward is folded into the
# weight layout (replicated / 1/aug_num-scaled W1 row blocks), so this one
# kernel serves both the augmentation and the plain path.
# ----------------------------------------------------------------------------
def _mlp_head_kernel(x_ref, w1t_ref, b1_ref, w2t_ref, b2_ref, o_ref):
    # bf16 MXU matmuls with f32 accumulation; bias/ReLU epilogue in f32
    # (v5e's VPU has no bf16).
    h = jnp.dot(x_ref[...].astype(jnp.bfloat16), w1t_ref[...],
                preferred_element_type=jnp.float32)
    h = jnp.maximum(h + b1_ref[...], 0.0)
    out = jnp.dot(h.astype(jnp.bfloat16), w2t_ref[...],
                  preferred_element_type=jnp.float32) + b2_ref[...]
    o_ref[...] = out.astype(o_ref.dtype)


def mlp_head(x, w1t, b1, w2t, b2, label_num):
    n, din = x.shape
    hpad, lpad = w1t.shape[1], w2t.shape[1]
    # lane-padded streamed bytes per row (f32 in, f32 out)
    per_row = 4 * _round_up(din, _LANE) + 4 * lpad
    # resident weights/biases, x2 because constant-index inputs are still
    # double-buffered by the pipeline
    resident = 2 * (2 * din * hpad + 4 * hpad + 2 * hpad * lpad + 4 * lpad)
    tile_n = _pick_tile_rows(n, per_row, resident)
    grid = (_cdiv(n, tile_n),)

    flops = 2 * n * (din * hpad + hpad * lpad)
    bytes_accessed = (4 * n * (din + lpad)
                      + 2 * din * hpad + 4 * hpad + 2 * hpad * lpad + 4 * lpad)

    out = pl.pallas_call(
        _mlp_head_kernel,
        out_shape=jax.ShapeDtypeStruct((n, lpad), jnp.float32),
        grid=grid,
        in_specs=[pl.BlockSpec((tile_n, din), lambda i: (i, 0)),
                  pl.BlockSpec((din, hpad), lambda i: (0, 0)),
                  pl.BlockSpec((1, hpad), lambda i: (0, 0)),
                  pl.BlockSpec((hpad, lpad), lambda i: (0, 0)),
                  pl.BlockSpec((1, lpad), lambda i: (0, 0))],
        out_specs=pl.BlockSpec((tile_n, lpad), lambda i: (i, 0)),
        compiler_params=_compiler_params(),
        cost_estimate=pl.CostEstimate(flops=flops, transcendentals=0,
                                      bytes_accessed=bytes_accessed),
    )(x, w1t, b1, w2t, b2)
    return out[:, :label_num]


# ----------------------------------------------------------------------------
# look_up_table Linear (non-target node types), row-gridded, resident weights.
# ----------------------------------------------------------------------------
def _linear_kernel(x_ref, wt_ref, b_ref, o_ref):
    acc = jnp.dot(x_ref[...].astype(jnp.bfloat16), wt_ref[...],
                  preferred_element_type=jnp.float32)
    o_ref[...] = (acc + b_ref[...]).astype(o_ref.dtype)


def linear_lut(x, wt_pad, b_pad, dout):
    n, din = x.shape
    dout_pad = wt_pad.shape[1]
    per_row = 4 * _round_up(din, _LANE) + 4 * dout_pad
    resident = 2 * (2 * din * dout_pad + 4 * dout_pad)
    tile_n = _pick_tile_rows(n, per_row, resident)
    grid = (_cdiv(n, tile_n),)
    flops = 2 * n * din * dout_pad
    bytes_accessed = 4 * n * (din + dout_pad) + 2 * din * dout_pad + 4 * dout_pad
    out = pl.pallas_call(
        _linear_kernel,
        out_shape=jax.ShapeDtypeStruct((n, dout_pad), jnp.float32),
        grid=grid,
        in_specs=[pl.BlockSpec((tile_n, din), lambda i: (i, 0)),
                  pl.BlockSpec((din, dout_pad), lambda i: (0, 0)),
                  pl.BlockSpec((1, dout_pad), lambda i: (0, 0))],
        out_specs=pl.BlockSpec((tile_n, dout_pad), lambda i: (i, 0)),
        compiler_params=_compiler_params(),
        cost_estimate=pl.CostEstimate(flops=flops, transcendentals=0,
                                      bytes_accessed=bytes_accessed),
    )(x, wt_pad, b_pad)
    return out[:, :dout]


# ----------------------------------------------------------------------------
# CompGCN_AUG (JAX / Pallas version)
# ----------------------------------------------------------------------------
class CompGCNAugPallas:
    def __init__(self, key, *, ntypes, feature_sizes, category_index,
                 target_category, label_num, embedding_size, aug_types,
                 hidden_dim, is_augmentation=True, project_nontarget=False):
        self.ntypes = ntypes
        self.feature_sizes = feature_sizes
        self.category_index = category_index
        self.target_category = target_category
        self.label_num = label_num
        self.embedding_size = embedding_size
        self.aug_types = aug_types
        self.is_augmentation = is_augmentation
        self.project_nontarget = project_nontarget
        self._last_feat_dict = None
        self._w1t_cache = {}

        tgt_idx = category_index[target_category]
        f_tgt = feature_sizes[tgt_idx]
        num_t = len(aug_types)
        in_dim = embedding_size * num_t + f_tgt if is_augmentation else f_tgt
        self.in_dim = in_dim
        self.f_tgt = f_tgt
        self.num_aug_types = num_t

        hpad = _round_up(hidden_dim, _LANE)
        lpad = _round_up(label_num, _LANE)
        dout_pad = _round_up(in_dim, _LANE)

        keys = jax.random.split(key, 2 * len(feature_sizes) + 4)
        k = 0
        # look_up_table: identity for the target category, Linear(size->in_dim)
        # otherwise.  Weights stored pre-transposed, lane-padded, bf16.
        self.look_up_table = []
        for i, size in enumerate(feature_sizes):
            if i == tgt_idx:
                self.look_up_table.append(None)            # identical_map
            else:
                w = 0.1 * jax.random.normal(keys[k], (in_dim, size), jnp.float32)
                b = 0.01 * jax.random.normal(keys[k + 1], (in_dim,), jnp.float32)
                wt_pad = (jnp.zeros((size, dout_pad), jnp.float32)
                          .at[:, :in_dim].set(w.T)).astype(jnp.bfloat16)
                b_pad = jnp.zeros((1, dout_pad), jnp.float32).at[0, :in_dim].set(b)
                self.look_up_table.append((wt_pad, b_pad))
            k += 2

        # TODO(synk): stand-in dense head for the CompGCN model call (source not
        # provided).  Params pre-transposed, zero-padded lane-dense; W1 kept in
        # f32 pieces split along the concat boundaries so the per-aug-type mean
        # can be folded into replicated/scaled rows per aug_num at call time.
        w1 = 0.1 * jax.random.normal(keys[k], (hidden_dim, in_dim), jnp.float32)
        b1 = 0.01 * jax.random.normal(keys[k + 1], (hidden_dim,), jnp.float32)
        w2 = 0.1 * jax.random.normal(keys[k + 2], (label_num, hidden_dim), jnp.float32)
        b2 = 0.01 * jax.random.normal(keys[k + 3], (label_num,), jnp.float32)
        w1t_full = jnp.zeros((in_dim, hpad), jnp.float32).at[:, :hidden_dim].set(w1.T)
        self._w1t_full_f32 = w1t_full
        self.b1 = jnp.zeros((1, hpad), jnp.float32).at[0, :hidden_dim].set(b1)
        self.w2t = (jnp.zeros((hpad, lpad), jnp.float32)
                    .at[:hidden_dim, :label_num].set(w2.T)).astype(jnp.bfloat16)
        self.b2 = jnp.zeros((1, lpad), jnp.float32).at[0, :label_num].set(b2)
        if is_augmentation:
            self._w1t_tgt_f32 = w1t_full[:f_tgt]
            self._w1t_aug_f32 = w1t_full[f_tgt:].reshape(num_t, embedding_size, hpad)
        else:
            self.w1t_bf16 = w1t_full.astype(jnp.bfloat16)

    def _combined_w1t(self, aug_num):
        """[W1_tgt ; (W1_aug0/a) x a ; (W1_aug1/a) x a ; ...]^T in bf16 — folds
        the per-aug-type mean into the first-layer weights so the kernel runs a
        single lane-dense matmul over [tgt | all aug instances]."""
        key = int(aug_num)
        if key not in self._w1t_cache:
            inv = 1.0 / float(aug_num)
            blocks = [self._w1t_tgt_f32]
            for t in range(self.num_aug_types):
                blocks.append(jnp.tile(self._w1t_aug_f32[t] * inv, (aug_num, 1)))
            self._w1t_cache[key] = jnp.concatenate(blocks, axis=0).astype(jnp.bfloat16)
        return self._w1t_cache[key]

    def __call__(self, node_feats, augmentated_features, augmentated_types,
                 augmentated_num, method):
        tgt = self.target_category
        if self.is_augmentation:
            if method not in ("mean", "concate"):
                raise ValueError(method)
            if method == "concate" and augmentated_num != 1:
                # TODO(synk): 'concate' with augmentated_num>1 changes the head
                # input width; the reference config sizes the head for 'mean'.
                raise NotImplementedError("method='concate' with augmentated_num > 1")
            tgt_feats = node_feats[tgt]
            n = tgt_feats.shape[0]
            # Cheap wrapper layout op: (a, n, e) -> (n, a*e); the mean/concat
            # math lives entirely in the replicated/scaled W1 rows.
            parts = [tgt_feats]
            for a_type in augmentated_types:
                af = augmentated_features[a_type]
                parts.append(jnp.transpose(af, (1, 0, 2)).reshape(n, -1))
            x_comb = jnp.concatenate(parts, axis=-1)
            w1t = self._combined_w1t(augmentated_num)
            logits = mlp_head(x_comb, w1t, self.b1, self.w2t, self.b2,
                              self.label_num)
        else:
            logits = mlp_head(node_feats[tgt], self.w1t_bf16, self.b1,
                              self.w2t, self.b2, self.label_num)

        # Non-target look_up_table projections are only consumed by the real
        # CompGCN message passing (stubbed) — dead work for the logits, so
        # flag-gated.
        if self.project_nontarget:
            feat_dict = {}
            for ntype in self.ntypes:
                lut = self.look_up_table[self.category_index[ntype]]
                if lut is not None:
                    feat_dict[ntype] = linear_lut(node_feats[ntype],
                                                  lut[0], lut[1], self.in_dim)
            self._last_feat_dict = feat_dict
        return logits


# ----------------------------------------------------------------------------
# Demo
# ----------------------------------------------------------------------------
if __name__ == "__main__":
    key = jax.random.PRNGKey(0)
    k_model, k_model2, k_feat0, k_feat1, k_aug0, k_aug1 = jax.random.split(key, 6)

    # small synthetic heterograph: two node types
    ntypes = ["paper", "author"]
    category_index = {"paper": 0, "author": 1}
    target_category = "paper"
    feature_sizes = [12, 16]          # paper feat = 12, author feat = 16
    num_nodes = {"paper": 8, "author": 16}
    embedding_size = 8
    aug_types = ["aug0", "aug1"]
    augmentated_num = 3
    hidden_dim = 32
    label_num = 4

    node_feats = {
        "paper": jax.random.normal(k_feat0, (num_nodes["paper"], feature_sizes[0]),
                                   jnp.float32),
        "author": jax.random.normal(k_feat1, (num_nodes["author"], feature_sizes[1]),
                                    jnp.float32),
    }
    augmentated_features = {
        "aug0": jax.random.normal(
            k_aug0, (augmentated_num, num_nodes["paper"], embedding_size), jnp.float32),
        "aug1": jax.random.normal(
            k_aug1, (augmentated_num, num_nodes["paper"], embedding_size), jnp.float32),
    }

    # Augmentation branch (mean folded into W1) + look_up_table kernel.
    model = CompGCNAugPallas(
        k_model, ntypes=ntypes, feature_sizes=feature_sizes,
        category_index=category_index, target_category=target_category,
        label_num=label_num, embedding_size=embedding_size,
        aug_types=aug_types, hidden_dim=hidden_dim,
        is_augmentation=True, project_nontarget=True)

    logits = model(node_feats, augmentated_features, aug_types,
                   augmentated_num, method="mean")
    logits = jax.block_until_ready(logits)
    assert logits.shape == (num_nodes["paper"], label_num), logits.shape
    assert logits.dtype == jnp.float32
    for v in model._last_feat_dict.values():
        jax.block_until_ready(v)
    assert model._last_feat_dict["author"].shape == (num_nodes["author"], model.in_dim)

    # Pure-jnp f32 reference for the target path (mean + concat + head).
    means = [jnp.mean(augmentated_features[a], axis=0) for a in aug_types]
    x_ref = jnp.concatenate([node_feats["paper"]] + means, axis=-1)
    h_ref = jnp.maximum(
        jnp.dot(x_ref, model._w1t_full_f32, precision=jax.lax.Precision.HIGHEST)
        + model.b1, 0.0)
    ref = (jnp.dot(h_ref, model.w2t.astype(jnp.float32),
                   precision=jax.lax.Precision.HIGHEST)
           + model.b2)[:, :label_num]
    max_err = float(jnp.max(jnp.abs(logits - ref)))
    assert jnp.allclose(logits, ref, atol=3e-2, rtol=3e-2), max_err

    # Non-augmentation branch (same gridded head kernel on raw target feats).
    model2 = CompGCNAugPallas(
        k_model2, ntypes=ntypes, feature_sizes=feature_sizes,
        category_index=category_index, target_category=target_category,
        label_num=label_num, embedding_size=embedding_size,
        aug_types=aug_types, hidden_dim=hidden_dim,
        is_augmentation=False, project_nontarget=False)
    logits2 = jax.block_until_ready(
        model2(node_feats, None, [], 0, method="mean"))
    assert logits2.shape == (num_nodes["paper"], label_num), logits2.shape

    print("KERNEL_OK")
</pallas_src>

<mosaic_0001>
module attributes {stable_mosaic.version = 11 : i64} {
  func.func @_mlp_head_kernel(%arg0: i32, %arg1: memref<8x60xf32, #tpu.memory_space<vmem>>, %arg2: memref<60x128xbf16, #tpu.memory_space<vmem>>, %arg3: memref<1x128xf32, #tpu.memory_space<vmem>>, %arg4: memref<128x128xbf16, #tpu.memory_space<vmem>>, %arg5: memref<1x128xf32, #tpu.memory_space<vmem>>, %arg6: memref<8x128xf32, #tpu.memory_space<vmem>>) attributes {dimension_semantics = [#tpu.dimension_semantics<parallel>], iteration_bounds = array<i64: 1>, scalar_prefetch = 0 : i64, scratch_operands = 0 : i64, tpu.core_type = #tpu.core_type<tc>, window_params = [{transform_indices = @transform_0, window_bounds = array<i64: 8, 60>}, {pipeline_mode = #tpu.pipeline_mode<synchronous>, transform_indices = @transform_1, window_bounds = array<i64: 60, 128>}, {pipeline_mode = #tpu.pipeline_mode<synchronous>, transform_indices = @transform_2, window_bounds = array<i64: 1, 128>}, {pipeline_mode = #tpu.pipeline_mode<synchronous>, transform_indices = @transform_3, window_bounds = array<i64: 128, 128>}, {pipeline_mode = #tpu.pipeline_mode<synchronous>, transform_indices = @transform_4, window_bounds = array<i64: 1, 128>}, {transform_indices = @transform_5, window_bounds = array<i64: 8, 128>}]} {
    %c0 = arith.constant 0 : index
    %c0_0 = arith.constant 0 : index
    %0 = vector.load %arg1[%c0, %c0_0] : memref<8x60xf32, #tpu.memory_space<vmem>>, vector<8x60xf32>
    %1 = arith.truncf %0 : vector<8x60xf32> to vector<8x60xbf16>
    %c0_1 = arith.constant 0 : index
    %c0_2 = arith.constant 0 : index
    %2 = vector.load %arg2[%c0_1, %c0_2] : memref<60x128xbf16, #tpu.memory_space<vmem>>, vector<60x128xbf16>
    %cst = arith.constant dense<0.000000e+00> : vector<8x128xf32>
    %3 = tpu.matmul %1, %2, %cst {dimension_numbers = #tpu.dot_dimension_numbers<[1], [0], [0], [1], [0, 0, 1, 1], [], []>} : vector<8x60xbf16>, vector<60x128xbf16>, vector<8x128xf32> -> vector<8x128xf32>
    %c0_3 = arith.constant 0 : index
    %c0_4 = arith.constant 0 : index
    %4 = vector.load %arg3[%c0_3, %c0_4] : memref<1x128xf32, #tpu.memory_space<vmem>>, vector<1x128xf32>
    %5 = vector.broadcast %4 : vector<1x128xf32> to vector<8x128xf32>
    %6 = arith.addf %3, %5 : vector<8x128xf32>
    %cst_5 = arith.constant 0.000000e+00 : f32
    %7 = vector.broadcast %cst_5 : f32 to vector<8x128xf32>
    %8 = arith.maximumf %6, %7 : vector<8x128xf32>
    %9 = arith.truncf %8 : vector<8x128xf32> to vector<8x128xbf16>
    %c0_6 = arith.constant 0 : index
    %c0_7 = arith.constant 0 : index
    %10 = vector.load %arg4[%c0_6, %c0_7] : memref<128x128xbf16, #tpu.memory_space<vmem>>, vector<128x128xbf16>
    %cst_8 = arith.constant dense<0.000000e+00> : vector<8x128xf32>
    %11 = tpu.matmul %9, %10, %cst_8 {dimension_numbers = #tpu.dot_dimension_numbers<[1], [0], [0], [1], [0, 0, 1, 1], [], []>} : vector<8x128xbf16>, vector<128x128xbf16>, vector<8x128xf32> -> vector<8x128xf32>
    %c0_9 = arith.constant 0 : index
    %c0_10 = arith.constant 0 : index
    %12 = vector.load %arg5[%c0_9, %c0_10] : memref<1x128xf32, #tpu.memory_space<vmem>>, vector<1x128xf32>
    %13 = vector.broadcast %12 : vector<1x128xf32> to vector<8x128xf32>
    %14 = arith.addf %11, %13 : vector<8x128xf32>
    %c0_11 = arith.constant 0 : index
    %c0_12 = arith.constant 0 : index
    %15 = vector.load %arg6[%c0_11, %c0_12] : memref<8x128xf32, #tpu.memory_space<vmem>>, vector<8x128xf32>
    tpu.vector_store %arg6[%c0_11, %c0_12], %14 {strides = array<i32>} : memref<8x128xf32, #tpu.memory_space<vmem>>, vector<8x128xf32>,
    return
  }
  func.func @transform_0(%arg0: i32) -> (i32, i32) {
    %c0_i32 = arith.constant 0 : i32
    %c0_i32_0 = arith.constant 0 : i32
    return %arg0, %c0_i32 : i32, i32
  }
  func.func @transform_1(%arg0: i32) -> (i32, i32) {
    %c0_i32 = arith.constant 0 : i32
    %c0_i32_0 = arith.constant 0 : i32
    %c0_i32_1 = arith.constant 0 : i32
    return %c0_i32, %c0_i32_0 : i32, i32
  }
  func.func @transform_2(%arg0: i32) -> (i32, i32) {
    %c0_i32 = arith.constant 0 : i32
    %c0_i32_0 = arith.constant 0 : i32
    %c0_i32_1 = arith.constant 0 : i32
    return %c0_i32, %c0_i32_0 : i32, i32
  }
  func.func @transform_3(%arg0: i32) -> (i32, i32) {
    %c0_i32 = arith.constant 0 : i32
    %c0_i32_0 = arith.constant 0 : i32
    %c0_i32_1 = arith.constant 0 : i32
    return %c0_i32, %c0_i32_0 : i32, i32
  }
  func.func @transform_4(%arg0: i32) -> (i32, i32) {
    %c0_i32 = arith.constant 0 : i32
    %c0_i32_0 = arith.constant 0 : i32
    %c0_i32_1 = arith.constant 0 : i32
    return %c0_i32, %c0_i32_0 : i32, i32
  }
  func.func @transform_5(%arg0: i32) -> (i32, i32) {
    %c0_i32 = arith.constant 0 : i32
    %c0_i32_0 = arith.constant 0 : i32
    return %arg0, %c0_i32 : i32, i32
  }
}

</mosaic_0001>

<llo_original>
// kernel: tpu_custom_call.1
$region0: #{tpu_custom_call.1}
  #allocation0 [shape = 'u32[]', space=smem, size = 0x4, offset = 0x4, fixed_abs, tag = 'smem constant byte address 0x4 - core index']
  #allocation1 [shape = 'u32[144,128]{1,0:T(1,128)}', space=vmem, size = 0x12000, scoped, tag = 'internal scratch']
  %s0 = inlined_call_operand.hbm [shape: f32[8,60], index: 0, kind: input, shape index: {}]
  %s1 = inlined_call_operand.hbm [shape: bf16[60,128], index: 1, kind: input, shape index: {}]
  %s2 = inlined_call_operand.hbm [shape: f32[1,128], index: 2, kind: input, shape index: {}]
  %s3 = inlined_call_operand.hbm [shape: bf16[128,128], index: 3, kind: input, shape index: {}]
  %s4 = inlined_call_operand.hbm [shape: f32[1,128], index: 4, kind: input, shape index: {}]
  %s5 = inlined_call_operand.hbm [shape: f32[8,128], index: 5, kind: output, shape index: {}]
  %s6 = sld [smem:[#allocation0]]
  $region50: #{tpu_custom_call.1} parent=0
    _
  %s8 = ssub.s32 1, %s6
  %s9 = scalar_select 0, %s8, %s6
  $region1: #{tpu_custom_call.1} parent=0
    #allocation2 [shape = 'u8[4096]{0}', space=vmem, size = 0x1000, scoped, tag = 'input window, operand 0, single buffered']
    #allocation3 [shape = 's32[1]{0}', space=sflag, size = 0x4, scoped, tag = 'scoped memory for tpu_custom_call.1']
    #allocation4 [shape = 's32[1]{0}', space=sflag, size = 0x4, scoped, tag = 'scoped memory for tpu_custom_call.1']
    #allocation5 [shape = 'u8[16384]{0}', space=vmem, size = 0x4000, scoped, tag = 'input window, operand 1, single buffered']
    #allocation6 [shape = 's32[1]{0}', space=sflag, size = 0x4, scoped, tag = 'scoped memory for tpu_custom_call.1']
    #allocation7 [shape = 'u8[512]{0}', space=vmem, size = 0x400, scoped, tag = 'input window, operand 2, single buffered']
    #allocation8 [shape = 'u8[32768]{0}', space=vmem, size = 0x8000, scoped, tag = 'input window, operand 3, single buffered']
    #allocation9 [shape = 's32[1]{0}', space=sflag, size = 0x4, scoped, tag = 'scoped memory for tpu_custom_call.1']
    #allocation10 [shape = 'u8[512]{0}', space=vmem, size = 0x400, scoped, tag = 'input window, operand 4, single buffered']
    #allocation11 [shape = 'u8[4096]{0}', space=vmem, size = 0x1000, scoped, tag = 'output window, operand 0, single buffered']
    %10 = vsyncpa [#allocation3], 0
    %11 = vsyncpa [#allocation6], 0
    %12 = vsyncpa [#allocation9], 0
    %13 = vsyncpa [#allocation4], 0
    // Predicated region
    $region2: #{tpu_custom_call.1} parent=1 // pred_check
      _
    $region3: #{tpu_custom_call.1} parent=1 // pred_check_branch
      %15 = sbr.rel (0) target = $region5
    $region4: #{tpu_custom_call.1} parent=1 // pred_region
      %s17 = ssub.s32 128, 128
      %18 = vsyncadd [#allocation3], %s17
      %s20 = sshll.u32 [#allocation2], 4
      %s21 = int_to_ptr.vmem [resolvable:$true] %s20
      %23 = dma.hbm_to_vmem [thread:$0]  %s0, 128, %s21, [#allocation3]
    $region5: #{tpu_custom_call.1} parent=1 // pred_fallthru
      _
    // Predicated region
    $region6: #{tpu_custom_call.1} parent=1 // pred_check
      _
    $region7: #{tpu_custom_call.1} parent=1 // pred_check_branch
      %25 = sbr.rel (0) target = $region9
    $region8: #{tpu_custom_call.1} parent=1 // pred_region
      %s27 = ssub.s32 512, 512
      %28 = vsyncadd [#allocation6], %s27
      %s29 = sshll.u32 [#allocation5], 4
      %s30 = int_to_ptr.vmem [resolvable:$true] %s29
      %35 = dma.hbm_to_vmem [thread:$0]  %s1, 512, %s30, [#allocation6], 64, 64, 4
    $region9: #{tpu_custom_call.1} parent=1 // pred_fallthru
      _
    // Predicated region
    $region10: #{tpu_custom_call.1} parent=1 // pred_check
      _
    $region11: #{tpu_custom_call.1} parent=1 // pred_check_branch
      %37 = sbr.rel (0) target = $region13
    $region12: #{tpu_custom_call.1} parent=1 // pred_region
      %s39 = ssub.s32 16, 16
      %40 = vsyncadd [#allocation6], %s39
      %s42 = sshll.u32 [#allocation7], 4
      %s43 = int_to_ptr.vmem [resolvable:$true] %s42
      %45 = dma.hbm_to_vmem [thread:$0]  %s2, 16, %s43, [#allocation6]
    $region13: #{tpu_custom_call.1} parent=1 // pred_fallthru
      _
    // Predicated region
    $region14: #{tpu_custom_call.1} parent=1 // pred_check
      _
    $region15: #{tpu_custom_call.1} parent=1 // pred_check_branch
      %47 = sbr.rel (0) target = $region17
    $region16: #{tpu_custom_call.1} parent=1 // pred_region
      %s49 = ssub.s32 1024, 1024
      %50 = vsyncadd [#allocation9], %s49
      %s51 = sshll.u32 [#allocation8], 4
      %s52 = int_to_ptr.vmem [resolvable:$true] %s51
      %57 = dma.hbm_to_vmem [thread:$0]  %s3, 1024, %s52, [#allocation9], 64, 64, 4
    $region17: #{tpu_custom_call.1} parent=1 // pred_fallthru
      _
    // Predicated region
    $region18: #{tpu_custom_call.1} parent=1 // pred_check
      _
    $region19: #{tpu_custom_call.1} parent=1 // pred_check_branch
      %59 = sbr.rel (0) target = $region21
    $region20: #{tpu_custom_call.1} parent=1 // pred_region
      %s61 = ssub.s32 16, 16
      %62 = vsyncadd [#allocation9], %s61
      %s64 = sshll.u32 [#allocation10], 4
      %s65 = int_to_ptr.vmem [resolvable:$true] %s64
      %67 = dma.hbm_to_vmem [thread:$0]  %s4, 16, %s65, [#allocation9]
    $region21: #{tpu_custom_call.1} parent=1 // pred_fallthru
      _
    // Predicated region
    $region22: #{tpu_custom_call.1} parent=1 // pred_check
      _
    $region23: #{tpu_custom_call.1} parent=1 // pred_check_branch
      %69 = sbr.rel (0) target = $region25
    $region24: #{tpu_custom_call.1} parent=1 // pred_region
      %70 = dma.done [#allocation3], 128
    $region25: #{tpu_custom_call.1} parent=1 // pred_fallthru
      _
    // Predicated region
    $region26: #{tpu_custom_call.1} parent=1 // pred_check
      _
    $region27: #{tpu_custom_call.1} parent=1 // pred_check_branch
      %72 = sbr.rel (0) target = $region29
    $region28: #{tpu_custom_call.1} parent=1 // pred_region
      %73 = dma.done [#allocation6], 512
    $region29: #{tpu_custom_call.1} parent=1 // pred_fallthru
      _
    // Predicated region
    $region30: #{tpu_custom_call.1} parent=1 // pred_check
      _
    $region31: #{tpu_custom_call.1} parent=1 // pred_check_branch
      %75 = sbr.rel (0) target = $region33
    $region32: #{tpu_custom_call.1} parent=1 // pred_region
      %76 = dma.done [#allocation6], 16
    $region33: #{tpu_custom_call.1} parent=1 // pred_fallthru
      _
    // Predicated region
    $region34: #{tpu_custom_call.1} parent=1 // pred_check
      _
    $region35: #{tpu_custom_call.1} parent=1 // pred_check_branch
      %78 = sbr.rel (0) target = $region37
    $region36: #{tpu_custom_call.1} parent=1 // pred_region
      %79 = dma.done [#allocation9], 1024
    $region37: #{tpu_custom_call.1} parent=1 // pred_fallthru
      _
    // Predicated region
    $region38: #{tpu_custom_call.1} parent=1 // pred_check
      _
    $region39: #{tpu_custom_call.1} parent=1 // pred_check_branch
      %81 = sbr.rel (0) target = $region41
    $region40: #{tpu_custom_call.1} parent=1 // pred_region
      %82 = dma.done [#allocation9], 16
    $region41: #{tpu_custom_call.1} parent=1 // pred_fallthru
      _
    %v84 = vld [vmem:[#allocation2] sm:$0xff]
    %v85 = vpack.c.bf16 %v84, %v84
    %v86 = vld [vmem:[#allocation5] sm:$0xf]
    %v87 = vld [vmem:[#allocation5 + $0x4] sm:$0xf]
    %v88 = vld [vmem:[#allocation5 + $0x8] sm:$0xf]
    %v89 = vld [vmem:[#allocation5 + $0xc] sm:$0xf]
    %v90 = vld [vmem:[#allocation5 + $0x10] sm:$0xf]
    %v91 = vld [vmem:[#allocation5 + $0x14] sm:$0xf]
    %v92 = vld [vmem:[#allocation5 + $0x18] sm:$0xf]
    %v93 = vld [vmem:[#allocation5 + $0x1c] sm:$0x3]
    %v94 = vld [vmem:[#allocation7] sm:$0x1]
    %v96 = vlaneseq
    %v97 = vshrl.u32 %v96, 7
    %v98 = vsub.s32 0, %v97
    %v99 = vrot.slane %v94, %v98
    %v109 = vunpack.c.l.b16 %v86
    %v110 = vunpack.c.l.b16 %v87
    %v111 = vunpack.c.l.b16 %v88
    %v112 = vunpack.c.l.b16 %v89
    %v113 = vunpack.c.l.b16 %v90
    %v114 = vunpack.c.l.b16 %v91
    %v115 = vunpack.c.l.b16 %v92
    %v116 = vunpack.c.l.b16 %v93
    %v117 = vpack.c.b16 %v110, %v109
    %v118 = vpack.c.b16 %v112, %v111
    %v119 = vpack.c.b16 %v114, %v113
    %v120 = vpack.c.b16 %v116, %v115
    %vm124 = vcmask 490496
    %v126 = vsel %vm124, %v85, 0
    %vm128 = vcmask 1045504
    %v130 = vsel %vm128, %v120, 0
    %132 = vmatprep.subr.bf16.mxu0 0
    %133 = vmatpush1.bf16.msra.mxu0 %v117
    %134 = vmatprep.subr.bf16.mxu0 0
    %135 = vmatpush1.bf16.msra.mxu0 %v118
    %136 = vmatprep.subr.bf16.mxu0 0
    %137 = vmatpush1.bf16.msra.mxu0 %v119
    %138 = vmatprep.subr.bf16.mxu0 0
    %139 = vmatpush1.bf16.msra.mxu0 %v130
    %140 = vmatprep.subr.bf16.mxu0 0
    %141 = vmatpush1.bf16.msra.mxu0 0
    %142 = vmatprep.subr.bf16.mxu0 0
    %143 = vmatpush1.bf16.msra.mxu0 0
    %144 = vmatprep.subr.bf16.mxu0 0
    %145 = vmatpush1.bf16.msra.mxu0 0
    %146 = vmatprep.subr.bf16.mxu0 0
    %147 = vmatpush1.bf16.msra.mxu0 0
    %148 = vmatprep.subr.bf16.mxu0 0
    %149 = vmatpush1.bf16.msra.mxu0 0
    %150 = vmatprep.subr.bf16.mxu0 0
    %151 = vmatpush1.bf16.msra.mxu0 0
    %152 = vmatprep.subr.bf16.mxu0 0
    %153 = vmatpush1.bf16.msra.mxu0 0
    %154 = vmatprep.subr.bf16.mxu0 0
    %155 = vmatpush1.bf16.msra.mxu0 0
    %156 = vmatprep.subr.bf16.mxu0 0
    %157 = vmatpush1.bf16.msra.mxu0 0
    %158 = vmatprep.subr.bf16.mxu0 0
    %159 = vmatpush1.bf16.msra.mxu0 0
    %160 = vmatprep.subr.bf16.mxu0 0
    %161 = vmatpush1.bf16.msra.mxu0 0
    %162 = vmatprep.subr.bf16.mxu0 0
    %163 = vmatpush1.bf16.msra.mxu0 0
    %164 = vmatprep.mubr.bf16.mxu0 0
    %165 = vmatmul.mubr.bf16.gmra.mrb[0].mxu0 %v126
    %v166 = vpop.f32.mrb[0].mxu0
    %v167 = vadd.f32 %v99, %v166
    %v168 = vpop.f32.mrb[0].mxu0
    %v169 = vpop.f32.mrb[0].mxu0
    %v170 = vpop.f32.mrb[0].mxu0
    %171 = vdwg.mxu0
    %v172 = vmax.f32 %v167, 0.0
    %v173 = vpack.c.bf16 %v172, %v172
    %v174 = vld [vmem:[#allocation8] sm:$0xf]
    %v175 = vld [vmem:[#allocation8 + $0x4] sm:$0xf]
    %v176 = vld [vmem:[#allocation8 + $0x8] sm:$0xf]
    %v177 = vld [vmem:[#allocation8 + $0xc] sm:$0xf]
    %v178 = vld [vmem:[#allocation8 + $0x10] sm:$0xf]
    %v179 = vld [vmem:[#allocation8 + $0x14] sm:$0xf]
    %v180 = vld [vmem:[#allocation8 + $0x18] sm:$0xf]
    %v181 = vld [vmem:[#allocation8 + $0x1c] sm:$0xf]
    %v182 = vld [vmem:[#allocation8 + $0x20] sm:$0xf]
    %v183 = vld [vmem:[#allocation8 + $0x24] sm:$0xf]
    %v184 = vld [vmem:[#allocation8 + $0x28] sm:$0xf]
    %v185 = vld [vmem:[#allocation8 + $0x2c] sm:$0xf]
    %v186 = vld [vmem:[#allocation8 + $0x30] sm:$0xf]
    %v187 = vld [vmem:[#allocation8 + $0x34] sm:$0xf]
    %v188 = vld [vmem:[#allocation8 + $0x38] sm:$0xf]
    %v189 = vld [vmem:[#allocation8 + $0x3c] sm:$0xf]
    %v190 = vld [vmem:[#allocation10] sm:$0x1]
    %v192 = vlaneseq
    %v193 = vshrl.u32 %v192, 7
    %v194 = vsub.s32 0, %v193
    %v195 = vrot.slane %v190, %v194
    %v213 = vunpack.c.l.b16 %v174
    %v214 = vunpack.c.l.b16 %v175
    %v215 = vunpack.c.l.b16 %v176
    %v216 = vunpack.c.l.b16 %v177
    %v217 = vunpack.c.l.b16 %v178
    %v218 = vunpack.c.l.b16 %v179
    %v219 = vunpack.c.l.b16 %v180
    %v220 = vunpack.c.l.b16 %v181
    %v221 = vunpack.c.l.b16 %v182
    %v222 = vunpack.c.l.b16 %v183
    %v223 = vunpack.c.l.b16 %v184
    %v224 = vunpack.c.l.b16 %v185
    %v225 = vunpack.c.l.b16 %v186
    %v226 = vunpack.c.l.b16 %v187
    %v227 = vunpack.c.l.b16 %v188
    %v228 = vunpack.c.l.b16 %v189
    %v229 = vpack.c.b16 %v214, %v213
    %v230 = vpack.c.b16 %v216, %v215
    %v231 = vpack.c.b16 %v218, %v217
    %v232 = vpack.c.b16 %v220, %v219
    %v233 = vpack.c.b16 %v222, %v221
    %v234 = vpack.c.b16 %v224, %v223
    %v235 = vpack.c.b16 %v226, %v225
    %v236 = vpack.c.b16 %v228, %v227
    %245 = vmatprep.subr.bf16.mxu0 0
    %246 = vmatpush1.bf16.msra.mxu0 %v229
    %247 = vmatprep.subr.bf16.mxu0 0
    %248 = vmatpush1.bf16.msra.mxu0 %v230
    %249 = vmatprep.subr.bf16.mxu0 0
    %250 = vmatpush1.bf16.msra.mxu0 %v231
    %251 = vmatprep.subr.bf16.mxu0 0
    %252 = vmatpush1.bf16.msra.mxu0 %v232
    %253 = vmatprep.subr.bf16.mxu0 0
    %254 = vmatpush1.bf16.msra.mxu0 %v233
    %255 = vmatprep.subr.bf16.mxu0 0
    %256 = vmatpush1.bf16.msra.mxu0 %v234
    %257 = vmatprep.subr.bf16.mxu0 0
    %258 = vmatpush1.bf16.msra.mxu0 %v235
    %259 = vmatprep.subr.bf16.mxu0 0
    %260 = vmatpush1.bf16.msra.mxu0 %v236
    %261 = vmatprep.subr.bf16.mxu0 0
    %262 = vmatpush1.bf16.msra.mxu0 0
    %263 = vmatprep.subr.bf16.mxu0 0
    %264 = vmatpush1.bf16.msra.mxu0 0
    %265 = vmatprep.subr.bf16.mxu0 0
    %266 = vmatpush1.bf16.msra.mxu0 0
    %267 = vmatprep.subr.bf16.mxu0 0
    %268 = vmatpush1.bf16.msra.mxu0 0
    %269 = vmatprep.subr.bf16.mxu0 0
    %270 = vmatpush1.bf16.msra.mxu0 0
    %271 = vmatprep.subr.bf16.mxu0 0
    %272 = vmatpush1.bf16.msra.mxu0 0
    %273 = vmatprep.subr.bf16.mxu0 0
    %274 = vmatpush1.bf16.msra.mxu0 0
    %275 = vmatprep.subr.bf16.mxu0 0
    %276 = vmatpush1.bf16.msra.mxu0 0
    %277 = vmatprep.mubr.bf16.mxu0 0
    %278 = vmatmul.mubr.bf16.gmra.mrb[0].mxu0 %v173
    %v279 = vpop.f32.mrb[0].mxu0
    %v280 = vadd.f32 %v195, %v279
    %v281 = vpop.f32.mrb[0].mxu0
    %v282 = vpop.f32.mrb[0].mxu0
    %v283 = vpop.f32.mrb[0].mxu0
    %284 = vdwg.mxu0
    %285 = vst [vmem:[#allocation11] sm:$0xff] %v280
    // Predicated region
    $region42: #{tpu_custom_call.1} parent=1 // pred_check
      _
    $region43: #{tpu_custom_call.1} parent=1 // pred_check_branch
      %287 = sbr.rel (0) target = $region45
    $region44: #{tpu_custom_call.1} parent=1 // pred_region
      %s289 = ssub.s32 128, 128
      %290 = vsyncadd [#allocation4], %s289
      %s292 = sshll.u32 [#allocation11], 4
      %s293 = int_to_ptr.vmem [resolvable:$true] %s292
      %295 = dma.vmem_to_hbm [thread:$0]  %s293, 128, %s5, [#allocation4]
    $region45: #{tpu_custom_call.1} parent=1 // pred_fallthru
      _
    // Predicated region
    $region46: #{tpu_custom_call.1} parent=1 // pred_check
      _
    $region47: #{tpu_custom_call.1} parent=1 // pred_check_branch
      %297 = sbr.rel (0) target = $region49
    $region48: #{tpu_custom_call.1} parent=1 // pred_region
      %298 = dma.done [#allocation4], 128
    $region49: #{tpu_custom_call.1} parent=1 // pred_fallthru
      _
    %299 = vsyncpa [#allocation3], 1
    %300 = vsyncpa [#allocation6], 1
    %301 = vsyncpa [#allocation9], 1
    %302 = vsyncpa [#allocation4], 1

</llo_original>
